<compile_context>
chip_gen: v7x
topology: tpu7x:2x2x1
jax: 0.10.0
libtpu: 0.0.40
codegen_flags: <defaults>
</compile_context>

<pallas_src>
import functools

import jax
import jax.numpy as jnp
from jax import lax
from jax.experimental import pallas as pl
from jax.experimental.pallas import tpu as pltpu


def _ranking_loss_kernel(a_ref, p_ref, loss_ref, m_sc, l_sc, diag_sc, *,
                         inv_temperature: float):
    qi = pl.program_id(0)           # anchor row-block index   ("parallel")
    ki = pl.program_id(1)           # positive col-block index ("arbitrary")
    tbq = a_ref.shape[0]
    tbk = p_ref.shape[0]
    row0 = qi * tbq                 # first global row    of this sim block
    col0 = ki * tbk                 # first global column of this sim block

    @pl.when(ki == 0)
    def _init():
        m_sc[...] = jnp.full_like(m_sc, -jnp.inf)
        l_sc[...] = jnp.zeros_like(l_sc)
        diag_sc[...] = jnp.zeros_like(diag_sc)

    # MXU matmul on native-dtype (bf16) operands; contract the last axis of
    # both tiles so positives are consumed K-major with no physical transpose.
    sim = lax.dot_general(
        a_ref[...], p_ref[...],
        dimension_numbers=(((1,), (1,)), ((), ())),
        preferred_element_type=jnp.float32,
    )                                           # (TBq, TBk) f32
    sim = sim * inv_temperature                 # scale logits, not the (B,D) tile

    # Global diagonal entries for rows [row0, row0+TBq) live only in column
    # blocks whose span [col0, col0+TBk) overlaps that row range.  With
    # decoupled tiles (TBq != TBk) one row block's diagonal can span several
    # column blocks, so accumulate (+=) into the zero-initialized scratch.
    @pl.when(jnp.logical_and(col0 < row0 + tbq, col0 + tbk > row0))
    def _diag():
        r = lax.broadcasted_iota(jnp.int32, sim.shape, 0) + row0
        c = lax.broadcasted_iota(jnp.int32, sim.shape, 1) + col0
        diag_sc[...] += jnp.sum(jnp.where(r == c, sim, 0.0),
                                axis=-1, keepdims=True)

    # Online logsumexp over column blocks; all row stats kept (TBq, 1).
    m_prev = m_sc[...]
    m_new = jnp.maximum(m_prev, jnp.max(sim, axis=-1, keepdims=True))
    alpha = jnp.exp(m_prev - m_new)
    p_exp = jnp.exp(sim - m_new)
    l_sc[...] = alpha * l_sc[...] + jnp.sum(p_exp, axis=-1, keepdims=True)
    m_sc[...] = m_new

    @pl.when(ki == pl.num_programs(1) - 1)
    def _finalize():
        lse = m_sc[...] + jnp.log(l_sc[...])            # (TBq, 1)
        loss_ref[...] = lse - diag_sc[...]              # per-row CE loss


def _vmem_bytes(bq, bk, d, itemsize):
    """Rough VMEM footprint: double-buffered inputs + lane-padded scratch/out +
    f32 sim/p_exp compiler temporaries."""
    return (2 * bq * d * itemsize      # anchors tile, double-buffered
            + 2 * bk * d * itemsize    # positives tile, double-buffered
            + 2 * bq * 128 * 4         # (TBq, 1) output block, lane-padded, x2
            + 3 * bq * 128 * 4         # m / l / diag scratch, lane-padded
            + 3 * bq * bk * 4)         # f32 sim / p_exp temporaries


def _auto_blocks(B, d, itemsize, sublane):
    # Column (MXU-N) tile: 128-wide already saturates the v5e MXU, 256 the
    # v6e/v7x MXU; 256 also keeps grid-step count (~0.35us/step overhead) down.
    bk = B
    for cand in (256, 128):
        if B > cand and B % cand == 0:
            bk = cand
            break
    # Row tile: as large as a conservative VMEM budget allows (v7x has only
    # 64 MiB physical VMEM).  Split in powers of two so nb_q stays even and
    # shards cleanly across v7x's 2 TensorCores.
    budget = 40 << 20
    bq, nb = B, 1
    while (_vmem_bytes(bq, bk, d, itemsize) > budget
           and B % (2 * nb) == 0
           and (B // (2 * nb)) % sublane == 0):
        nb *= 2
        bq = B // nb
    # Prefer nb_q >= 2 on large batches so the "parallel" row axis can use both
    # of v7x's TensorCores (near-free on single-TC v5e/v6e).
    if bq == B and B >= 1024 and B % 2 == 0 and (B // 2) % sublane == 0:
        bq = B // 2
    return bq, bk


def multiple_ranking_loss_bi_encoder(anchors, positives, temperature: float = 1.0,
                                     block_q: int | None = None,
                                     block_k: int | None = None,
                                     cast_to_bf16: bool = True,
                                     single_buffer_anchors: bool = False):
    """Pallas TPU implementation of MultipleRankingLossBiEncoder.forward.

    anchors:   (B, D) float array
    positives: (B, D) float array
    returns:   scalar f32 loss (mean cross-entropy with labels = arange(B))
    """
    B, D = anchors.shape
    assert positives.shape == (B, D)

    # bf16 operands halve HBM/DMA bytes and take the bf16 MXU fast path; the
    # online logsumexp still accumulates logits in f32.
    if cast_to_bf16 and anchors.dtype == jnp.float32:
        anchors = anchors.astype(jnp.bfloat16)
        positives = positives.astype(jnp.bfloat16)

    itemsize = jnp.dtype(anchors.dtype).itemsize
    # Minimum sublane tile of the input dtype (f32: 8, bf16: 16, int8/fp8: 32).
    sublane = {4: 8, 2: 16, 1: 32}[itemsize]

    auto_q, auto_k = _auto_blocks(B, D, itemsize, sublane)
    bq = block_q if block_q is not None else auto_q
    bk = block_k if block_k is not None else auto_k

    assert B % bq == 0 and B % bk == 0, "batch must be divisible by both tiles"
    assert bq == B or bq % sublane == 0, f"block_q must be a multiple of {sublane}"
    assert bk == B or bk % sublane == 0, f"block_k must be a multiple of {sublane}"
    nb_q, nb_k = B // bq, B // bk

    kernel = functools.partial(
        _ranking_loss_kernel, inv_temperature=1.0 / float(temperature))

    cost = pl.CostEstimate(
        flops=2 * B * B * D,
        transcendentals=B * B,
        # anchors read once, positives re-streamed once per row block
        bytes_accessed=(B * D + nb_q * B * D) * itemsize + B * 4,
    )

    # Anchors block only changes once per row block (constant across ki), so it
    # can optionally be single-buffered to free VMEM for a larger TBq.
    if single_buffer_anchors:
        a_spec = pl.BlockSpec((bq, D), lambda qi, ki: (qi, 0),
                              pipeline_mode=pl.Buffered(1))
    else:
        a_spec = pl.BlockSpec((bq, D), lambda qi, ki: (qi, 0))

    per_row_loss = pl.pallas_call(
        kernel,
        out_shape=jax.ShapeDtypeStruct((B, 1), jnp.float32),
        grid_spec=pltpu.PrefetchScalarGridSpec(
            num_scalar_prefetch=0,
            grid=(nb_q, nb_k),
            in_specs=[
                a_spec,                                          # anchors
                pl.BlockSpec((bk, D), lambda qi, ki: (ki, 0)),   # positives
            ],
            out_specs=pl.BlockSpec((bq, 1), lambda qi, ki: (qi, 0)),
            scratch_shapes=[
                pltpu.VMEM((bq, 1), jnp.float32),   # running max
                pltpu.VMEM((bq, 1), jnp.float32),   # running sum
                pltpu.VMEM((bq, 1), jnp.float32),   # diagonal logits
            ],
        ),
        compiler_params=pltpu.CompilerParams(
            dimension_semantics=("parallel", "arbitrary"),
            # Tiles are budgeted to ~40 MiB; 48 MiB scoped limit leaves
            # headroom while staying under v7x's 64 MiB physical VMEM.
            vmem_limit_bytes=48 * 1024 * 1024,
        ),
        cost_estimate=cost,
    )(anchors, positives)

    return jnp.mean(per_row_loss)


def _reference_loss(anchors, positives, temperature=1.0):
    sim = (anchors / temperature) @ positives.T
    logz = jax.nn.logsumexp(sim, axis=-1)
    diag = jnp.diagonal(sim)
    return jnp.mean(logz - diag)


if __name__ == "__main__":
    key = jax.random.PRNGKey(0)
    k1, k2 = jax.random.split(key)

    # Small shapes chosen so the grid is (2, 4) with decoupled TBq != TBk:
    # exercises the online logsumexp across column blocks and the generalized
    # diagonal gating (each row block's diagonal spans two column blocks).
    B, D = 64, 128
    temperature = 0.5
    anchors = jax.random.normal(k1, (B, D), dtype=jnp.float32)
    positives = jax.random.normal(k2, (B, D), dtype=jnp.float32)

    loss = multiple_ranking_loss_bi_encoder(anchors, positives, temperature,
                                            block_q=32, block_k=16)
    loss = jax.block_until_ready(loss)

    # The kernel computes on bf16-rounded operands (f32 accumulation); compare
    # against a reference evaluated on the same rounded operands.
    a_r = anchors.astype(jnp.bfloat16).astype(jnp.float32)
    p_r = positives.astype(jnp.bfloat16).astype(jnp.float32)
    ref = _reference_loss(a_r, p_r, temperature)
    assert jnp.allclose(loss, ref, rtol=1e-3, atol=1e-3), (loss, ref)

    # Also exercise the automatic tile-selection path.
    loss2 = jax.block_until_ready(
        multiple_ranking_loss_bi_encoder(anchors, positives, temperature))
    assert jnp.allclose(loss2, ref, rtol=1e-3, atol=1e-3), (loss2, ref)

    print("KERNEL_OK")
</pallas_src>

<mosaic_0001>
module attributes {stable_mosaic.version = 11 : i64} {
  func.func @_ranking_loss_kernel(%arg0: i32, %arg1: i32, %arg2: memref<32x128xbf16, #tpu.memory_space<vmem>>, %arg3: memref<16x128xbf16, #tpu.memory_space<vmem>>, %arg4: memref<32x1xf32, #tpu.memory_space<vmem>>, %arg5: memref<32x1xf32, #tpu.memory_space<vmem>>, %arg6: memref<32x1xf32, #tpu.memory_space<vmem>>, %arg7: memref<32x1xf32, #tpu.memory_space<vmem>>) attributes {dimension_semantics = [#tpu.dimension_semantics<parallel>, #tpu.dimension_semantics<arbitrary>], iteration_bounds = array<i64: 2, 4>, scalar_prefetch = 0 : i64, scratch_operands = 3 : i64, tpu.core_type = #tpu.core_type<tc>, window_params = [{transform_indices = @transform_0, window_bounds = array<i64: 32, 128>}, {transform_indices = @transform_1, window_bounds = array<i64: 16, 128>}, {transform_indices = @transform_2, window_bounds = array<i64: 32, 1>}]} {
    %c32_i32 = arith.constant 32 : i32
    %0 = arith.muli %arg0, %c32_i32 : i32
    %c16_i32 = arith.constant 16 : i32
    %1 = arith.muli %arg1, %c16_i32 : i32
    %c0_i32 = arith.constant 0 : i32
    %2 = arith.cmpi eq, %arg1, %c0_i32 : i32
    %3 = arith.extui %2 : i1 to i32
    %c0_i32_0 = arith.constant 0 : i32
    %4 = arith.cmpi ne, %3, %c0_i32_0 : i32
    scf.if %4 {
      %cst_19 = arith.constant 0xFF800000 : f32
      %36 = vector.broadcast %cst_19 : f32 to vector<32x1xf32>
      %c0_20 = arith.constant 0 : index
      %c0_21 = arith.constant 0 : index
      %37 = vector.load %arg5[%c0_20, %c0_21] : memref<32x1xf32, #tpu.memory_space<vmem>>, vector<32x1xf32>
      tpu.vector_store %arg5[%c0_20, %c0_21], %36 {strides = array<i32>} : memref<32x1xf32, #tpu.memory_space<vmem>>, vector<32x1xf32>,
      %cst_22 = arith.constant 0.000000e+00 : f32
      %38 = vector.broadcast %cst_22 : f32 to vector<32x1xf32>
      %c0_23 = arith.constant 0 : index
      %c0_24 = arith.constant 0 : index
      %39 = vector.load %arg6[%c0_23, %c0_24] : memref<32x1xf32, #tpu.memory_space<vmem>>, vector<32x1xf32>
      tpu.vector_store %arg6[%c0_23, %c0_24], %38 {strides = array<i32>} : memref<32x1xf32, #tpu.memory_space<vmem>>, vector<32x1xf32>,
      %cst_25 = arith.constant 0.000000e+00 : f32
      %40 = vector.broadcast %cst_25 : f32 to vector<32x1xf32>
      %c0_26 = arith.constant 0 : index
      %c0_27 = arith.constant 0 : index
      %41 = vector.load %arg7[%c0_26, %c0_27] : memref<32x1xf32, #tpu.memory_space<vmem>>, vector<32x1xf32>
      tpu.vector_store %arg7[%c0_26, %c0_27], %40 {strides = array<i32>} : memref<32x1xf32, #tpu.memory_space<vmem>>, vector<32x1xf32>,
    } else {
    }
    %c0 = arith.constant 0 : index
    %c0_1 = arith.constant 0 : index
    %5 = vector.load %arg2[%c0, %c0_1] : memref<32x128xbf16, #tpu.memory_space<vmem>>, vector<32x128xbf16>
    %c0_2 = arith.constant 0 : index
    %c0_3 = arith.constant 0 : index
    %6 = vector.load %arg3[%c0_2, %c0_3] : memref<16x128xbf16, #tpu.memory_space<vmem>>, vector<16x128xbf16>
    %cst = arith.constant dense<0.000000e+00> : vector<32x16xf32>
    %7 = tpu.matmul %5, %6, %cst {dimension_numbers = #tpu.dot_dimension_numbers<[1], [1], [0], [0], [0, 0, 1, 0], [], []>} : vector<32x128xbf16>, vector<16x128xbf16>, vector<32x16xf32> -> vector<32x16xf32>
    %cst_4 = arith.constant 2.000000e+00 : f32
    %8 = vector.broadcast %cst_4 : f32 to vector<32x16xf32>
    %9 = arith.mulf %7, %8 : vector<32x16xf32>
    %c32_i32_5 = arith.constant 32 : i32
    %10 = arith.addi %0, %c32_i32_5 : i32
    %11 = arith.cmpi slt, %1, %10 : i32
    %c16_i32_6 = arith.constant 16 : i32
    %12 = arith.addi %1, %c16_i32_6 : i32
    %13 = arith.cmpi sgt, %12, %0 : i32
    %14 = arith.andi %11, %13 : i1
    %15 = arith.extui %14 : i1 to i32
    %c0_i32_7 = arith.constant 0 : i32
    %16 = arith.cmpi ne, %15, %c0_i32_7 : i32
    scf.if %16 {
      %36 = tpu.iota {dimensions = array<i32: 0>} : vector<32x16xi32>
      %37 = vector.broadcast %0 : i32 to vector<32x16xi32>
      %38 = arith.addi %36, %37 : vector<32x16xi32>
      %39 = tpu.iota {dimensions = array<i32: 1>} : vector<32x16xi32>
      %40 = vector.broadcast %1 : i32 to vector<32x16xi32>
      %41 = arith.addi %39, %40 : vector<32x16xi32>
      %c0_19 = arith.constant 0 : index
      %c0_20 = arith.constant 0 : index
      %42 = vector.load %arg7[%c0_19, %c0_20] : memref<32x1xf32, #tpu.memory_space<vmem>>, vector<32x1xf32>
      %43 = arith.cmpi eq, %38, %41 : vector<32x16xi32>
      %cst_21 = arith.constant 0.000000e+00 : f32
      %44 = vector.broadcast %cst_21 : f32 to vector<32x16xf32>
      %45 = arith.select %43, %9, %44 : vector<32x16xi1>, vector<32x16xf32>
      %cst_22 = arith.constant dense<0.000000e+00> : vector<32xf32>
      %46 = vector.multi_reduction <add>, %45, %cst_22 [1] : vector<32x16xf32> to vector<32xf32>
      %47 = vector.shape_cast %46 : vector<32xf32> to vector<32x1xf32>
      %48 = arith.addf %42, %47 : vector<32x1xf32>
      %c0_23 = arith.constant 0 : index
      %c0_24 = arith.constant 0 : index
      %49 = vector.load %arg7[%c0_23, %c0_24] : memref<32x1xf32, #tpu.memory_space<vmem>>, vector<32x1xf32>
      tpu.vector_store %arg7[%c0_23, %c0_24], %48 {strides = array<i32>} : memref<32x1xf32, #tpu.memory_space<vmem>>, vector<32x1xf32>,
    } else {
    }
    %c0_8 = arith.constant 0 : index
    %c0_9 = arith.constant 0 : index
    %17 = vector.load %arg5[%c0_8, %c0_9] : memref<32x1xf32, #tpu.memory_space<vmem>>, vector<32x1xf32>
    %cst_10 = arith.constant dense<0xFF800000> : vector<32xf32>
    %18 = vector.multi_reduction <maximumf>, %9, %cst_10 [1] : vector<32x16xf32> to vector<32xf32>
    %19 = vector.shape_cast %18 : vector<32xf32> to vector<32x1xf32>
    %20 = arith.maximumf %17, %19 : vector<32x1xf32>
    %21 = arith.subf %17, %20 : vector<32x1xf32>
    %22 = math.exp %21 : vector<32x1xf32>
    %23 = vector.broadcast %20 : vector<32x1xf32> to vector<32x16xf32>
    %24 = arith.subf %9, %23 : vector<32x16xf32>
    %25 = math.exp %24 : vector<32x16xf32>
    %c0_11 = arith.constant 0 : index
    %c0_12 = arith.constant 0 : index
    %26 = vector.load %arg6[%c0_11, %c0_12] : memref<32x1xf32, #tpu.memory_space<vmem>>, vector<32x1xf32>
    %27 = arith.mulf %22, %26 : vector<32x1xf32>
    %cst_13 = arith.constant dense<0.000000e+00> : vector<32xf32>
    %28 = vector.multi_reduction <add>, %25, %cst_13 [1] : vector<32x16xf32> to vector<32xf32>
    %29 = vector.shape_cast %28 : vector<32xf32> to vector<32x1xf32>
    %30 = arith.addf %27, %29 : vector<32x1xf32>
    %c0_14 = arith.constant 0 : index
    %c0_15 = arith.constant 0 : index
    %31 = vector.load %arg6[%c0_14, %c0_15] : memref<32x1xf32, #tpu.memory_space<vmem>>, vector<32x1xf32>
    tpu.vector_store %arg6[%c0_14, %c0_15], %30 {strides = array<i32>} : memref<32x1xf32, #tpu.memory_space<vmem>>, vector<32x1xf32>,
    %c0_16 = arith.constant 0 : index
    %c0_17 = arith.constant 0 : index
    %32 = vector.load %arg5[%c0_16, %c0_17] : memref<32x1xf32, #tpu.memory_space<vmem>>, vector<32x1xf32>
    tpu.vector_store %arg5[%c0_16, %c0_17], %20 {strides = array<i32>} : memref<32x1xf32, #tpu.memory_space<vmem>>, vector<32x1xf32>,
    %c3_i32 = arith.constant 3 : i32
    %33 = arith.cmpi eq, %arg1, %c3_i32 : i32
    %34 = arith.extui %33 : i1 to i32
    %c0_i32_18 = arith.constant 0 : i32
    %35 = arith.cmpi ne, %34, %c0_i32_18 : i32
    scf.if %35 {
      %c0_19 = arith.constant 0 : index
      %c0_20 = arith.constant 0 : index
      %36 = vector.load %arg5[%c0_19, %c0_20] : memref<32x1xf32, #tpu.memory_space<vmem>>, vector<32x1xf32>
      %c0_21 = arith.constant 0 : index
      %c0_22 = arith.constant 0 : index
      %37 = vector.load %arg6[%c0_21, %c0_22] : memref<32x1xf32, #tpu.memory_space<vmem>>, vector<32x1xf32>
      %38 = math.log %37 : vector<32x1xf32>
      %39 = arith.addf %36, %38 : vector<32x1xf32>
      %c0_23 = arith.constant 0 : index
      %c0_24 = arith.constant 0 : index
      %40 = vector.load %arg7[%c0_23, %c0_24] : memref<32x1xf32, #tpu.memory_space<vmem>>, vector<32x1xf32>
      %41 = arith.subf %39, %40 : vector<32x1xf32>
      %c0_25 = arith.constant 0 : index
      %c0_26 = arith.constant 0 : index
      %42 = vector.load %arg4[%c0_25, %c0_26] : memref<32x1xf32, #tpu.memory_space<vmem>>, vector<32x1xf32>
      tpu.vector_store %arg4[%c0_25, %c0_26], %41 {strides = array<i32>} : memref<32x1xf32, #tpu.memory_space<vmem>>, vector<32x1xf32>,
    } else {
    }
    return
  }
  func.func @transform_0(%arg0: i32, %arg1: i32) -> (i32, i32) {
    %c0_i32 = arith.constant 0 : i32
    %c0_i32_0 = arith.constant 0 : i32
    return %arg0, %c0_i32 : i32, i32
  }
  func.func @transform_1(%arg0: i32, %arg1: i32) -> (i32, i32) {
    %c0_i32 = arith.constant 0 : i32
    %c0_i32_0 = arith.constant 0 : i32
    return %arg1, %c0_i32 : i32, i32
  }
  func.func @transform_2(%arg0: i32, %arg1: i32) -> (i32, i32) {
    %c0_i32 = arith.constant 0 : i32
    %c0_i32_0 = arith.constant 0 : i32
    return %arg0, %c0_i32 : i32, i32
  }
}

</mosaic_0001>

<llo_original>
// kernel: tpu_custom_call.1
$region0: #{tpu_custom_call.1}
  #allocation0 [shape = 'u32[]', space=smem, size = 0x4, offset = 0x4, fixed_abs, tag = 'smem constant byte address 0x4 - core index']
  #allocation1 [shape = 'u32[144,128]{1,0:T(1,128)}', space=vmem, size = 0x12000, scoped, tag = 'internal scratch']
  #allocation2 [shape = 'f32[32,1]{1,0:T(8,128)}', space=vmem, size = 0x4000, scoped, tag = 'scratch operand']
  #allocation3 [shape = 'f32[32,1]{1,0:T(8,128)}', space=vmem, size = 0x4000, scoped, tag = 'scratch operand']
  #allocation4 [shape = 'f32[32,1]{1,0:T(8,128)}', space=vmem, size = 0x4000, scoped, tag = 'scratch operand']
  %s0 = inlined_call_operand.hbm [shape: bf16[64,128], index: 0, kind: input, shape index: {}]
  %s1 = inlined_call_operand.hbm [shape: bf16[64,128], index: 1, kind: input, shape index: {}]
  %s2 = inlined_call_operand.vmem [shape: f32[64,1], index: 2, kind: output, shape index: {}]
  %s3 = sld [smem:[#allocation0]]
  $region61: #{tpu_custom_call.1} parent=0
    _
  %s5 = ssub.s32 1, %s3
  %s6 = scalar_select 0, %s5, %s3
  $region1: #{tpu_custom_call.1} parent=0
    #allocation5 [shape = 'u8[16384]{0}', space=vmem, size = 0x4000, scoped, tag = 'input window, operand 0']
    #allocation6 [shape = 's32[2]{0}', space=sflag, size = 0x8, scoped, tag = 'scoped memory for tpu_custom_call.1']
    #allocation7 [shape = 'u8[8192]{0}', space=vmem, size = 0x2000, scoped, tag = 'input window, operand 1']
    #allocation8 [shape = 's32[2]{0}', space=sflag, size = 0x8, scoped, tag = 'scoped memory for tpu_custom_call.1']
    %7 = vsyncpa [#allocation6], 0
    %s8 = scalar_lea.sflag [#allocation6], 1
    %9 = vsyncpa %s8, 0
    %10 = vsyncpa [#allocation8], 0
    %s11 = scalar_lea.sflag [#allocation8], 1
    %12 = vsyncpa %s11, 0
    loop: start=0, step=1, limit=10
    $region2: #{tpu_custom_call.1} parent=1 // loop_pre_header
      _
    $region3: #{tpu_custom_call.1} parent=1 // loop_header
      %s14 = sphi 0, %s18
      %p15 = scmp.ge.s32.totalorder %s14, 10
      %s21 = sphi 0, %s33
      %s22 = sphi 0, %s29
      %s23 = sphi 0, %s21
      %s24 = sphi 0, %s22
      %s25 = sphi 0, %s23
      %s26 = sphi 0, %s24
      %s36 = sphi 0, %s38
      %s39 = sphi 0, %s36
      %s40 = sphi 0, %s39
      %s56 = sphi 0, %s40
      %s62 = sphi 0, %s64
      %s65 = sphi 0, %s62
      %s66 = sphi 0, %s65
      %s82 = sphi 0, %s66
      %s88 = sphi 0, %s90
      %s91 = sphi 0, %s88
      %s92 = sphi 0, %s91
      %s108 = sphi 0, %s92
    $region4: #{tpu_custom_call.1} parent=1 // loop_header_branch
      %17 = sbr.rel (%p15) target = $region8
    $region5: #{tpu_custom_call.1} parent=1 // loop_body
      %s19 = ssub.s32 %s14, 1
      %s20 = ssub.s32 %s14, 2
      %s27 = sadd.s32 1, %s22
      %p28 = scmp.ge.s32.totalorder %s27, 4
      %s29 = scalar_select %p28, 0, %s27
      %s30 = sadd.s32 1, %s21
      %s31 = scalar_select %p28, %s30, %s21
      %p32 = scmp.ge.s32.totalorder %s31, 2
      %s33 = scalar_select %p32, 0, %s31
      %s34 = ssub.s32 %s21, %s33
      %p35 = scmp.eq.s32.totalorder %s34, 0
      %s37 = sadd.s32 %s36, 1
      %s38 = scalar_select %p35, %s36, %s37
      %p41 = pneg %p35
      %p42 = scmp.eq.s32.totalorder %s14, 7
      %p43 = por %p41, %p42
      %p44 = scmp.ne.s32.totalorder %s36, %s39
      %p45 = scmp.eq.s32.totalorder %s14, 0
      %p46 = por %p44, %p45
      %p47 = scmp.ne.s32.totalorder %s36, %s39
      %p48 = scmp.eq.s32.totalorder %s19, 7
      %p49 = por %p47, %p48
      %p50 = scmp.ne.s32.totalorder %s39, %s40
      %p51 = scmp.eq.s32.totalorder %s19, 0
      %p52 = por %p50, %p51
      %p53 = scmp.ne.s32.totalorder %s39, %s40
      %p54 = scmp.eq.s32.totalorder %s20, 7
      %p55 = por %p53, %p54
      %p57 = scmp.ne.s32.totalorder %s40, %s56
      %p58 = scmp.eq.s32.totalorder %s20, 0
      %p59 = por %p57, %p58
      %s60 = ssub.s32 %s22, %s29
      %p61 = scmp.eq.s32.totalorder %s60, 0
      %s63 = sadd.s32 %s62, 1
      %s64 = scalar_select %p61, %s62, %s63
      %p67 = pneg %p61
      %p68 = scmp.eq.s32.totalorder %s14, 7
      %p69 = por %p67, %p68
      %p70 = scmp.ne.s32.totalorder %s62, %s65
      %p71 = scmp.eq.s32.totalorder %s14, 0
      %p72 = por %p70, %p71
      %p73 = scmp.ne.s32.totalorder %s62, %s65
      %p74 = scmp.eq.s32.totalorder %s19, 7
      %p75 = por %p73, %p74
      %p76 = scmp.ne.s32.totalorder %s65, %s66
      %p77 = scmp.eq.s32.totalorder %s19, 0
      %p78 = por %p76, %p77
      %p79 = scmp.ne.s32.totalorder %s65, %s66
      %p80 = scmp.eq.s32.totalorder %s20, 7
      %p81 = por %p79, %p80
      %p83 = scmp.ne.s32.totalorder %s66, %s82
      %p84 = scmp.eq.s32.totalorder %s20, 0
      %p85 = por %p83, %p84
      %s86 = ssub.s32 %s21, %s33
      %p87 = scmp.eq.s32.totalorder %s86, 0
      %s89 = sadd.s32 %s88, 1
      %s90 = scalar_select %p87, %s88, %s89
      %p93 = pneg %p87
      %p94 = scmp.eq.s32.totalorder %s14, 7
      %p95 = por %p93, %p94
      %p96 = scmp.ne.s32.totalorder %s88, %s91
      %p97 = scmp.eq.s32.totalorder %s14, 0
      %p98 = por %p96, %p97
      %p99 = scmp.ne.s32.totalorder %s88, %s91
      %p100 = scmp.eq.s32.totalorder %s19, 7
      %p101 = por %p99, %p100
      %p102 = scmp.ne.s32.totalorder %s91, %s92
      %p103 = scmp.eq.s32.totalorder %s19, 0
      %p104 = por %p102, %p103
      %p105 = scmp.ne.s32.totalorder %s91, %s92
      %p106 = scmp.eq.s32.totalorder %s20, 7
      %p107 = por %p105, %p106
      %p109 = scmp.ne.s32.totalorder %s92, %s108
      %p110 = scmp.eq.s32.totalorder %s20, 0
      %p111 = por %p109, %p110
      %p112 = scmp.le.s32.totalorder 1, %s14
      %p113 = scmp.lt.s32.totalorder %s14, 9
      %p114 = pnand %p112, %p113
      %p115 = pneg %p114
      // Predicated region
      $region9: #{tpu_custom_call.1} parent=5 // pred_check
        _
      $region10: #{tpu_custom_call.1} parent=5 // pred_check_branch
        %117 = sbr.rel (%p114) target = $region12
      $region11: #{tpu_custom_call.1} parent=5 // pred_region
        %s118 = ssub.s32 %s14, 1
      $region12: #{tpu_custom_call.1} parent=5 // pred_fallthru
        _
      %p119 = scmp.lt.s32.totalorder %s14, 8
      // Predicated region
      $region13: #{tpu_custom_call.1} parent=5 // pred_check
        %p120 = pneg %p119
      $region14: #{tpu_custom_call.1} parent=5 // pred_check_branch
        %122 = sbr.rel (%p120) target = $region16
      $region15: #{tpu_custom_call.1} parent=5 // pred_region
        // Predicated region
        $region17: #{tpu_custom_call.1} parent=15 // pred_check
          %p123 = pneg %p46
        $region18: #{tpu_custom_call.1} parent=15 // pred_check_branch
          %125 = sbr.rel (%p123) target = $region20
        $region19: #{tpu_custom_call.1} parent=15 // pred_region
          %s126 = sand.u32 %s36, 1
          %s127 = scalar_lea.sflag [#allocation6], %s126
          %s128 = sand.u32 %s36, 1
          %s129 = smul.addr %s128, 16
          %s130 = scalar_lea.vmem [#allocation5], %s129
          %s131 = smul.u32 4, %s21
          %s133 = ssub.s32 256, 256
          %134 = vsyncadd %s127, %s133
          %s135 = smul.addr %s131, 64
          %s136 = scalar_lea.hbm %s0, %s135
          %s137 = sshll.u32 %s130, 4
          %s138 = int_to_ptr.vmem [resolvable:$true] %s137
          %143 = dma.hbm_to_vmem [thread:$0]  %s136, 256, %s138, %s127, 64, 64, 4
        $region20: #{tpu_custom_call.1} parent=15 // pred_fallthru
          _
        // Predicated region
        $region21: #{tpu_custom_call.1} parent=15 // pred_check
          %p144 = pneg %p72
        $region22: #{tpu_custom_call.1} parent=15 // pred_check_branch
          %146 = sbr.rel (%p144) target = $region24
        $region23: #{tpu_custom_call.1} parent=15 // pred_region
          %s147 = sand.u32 %s62, 1
          %s148 = scalar_lea.sflag [#allocation8], %s147
          %s149 = sand.u32 %s62, 1
          %s150 = smul.addr %s149, 8
          %s151 = scalar_lea.vmem [#allocation7], %s150
          %s152 = smul.u32 2, %s22
          %s154 = ssub.s32 128, 128
          %155 = vsyncadd %s148, %s154
          %s156 = smul.addr %s152, 64
          %s157 = scalar_lea.hbm %s1, %s156
          %s158 = sshll.u32 %s151, 4
          %s159 = int_to_ptr.vmem [resolvable:$true] %s158
          %164 = dma.hbm_to_vmem [thread:$0]  %s157, 128, %s159, %s148, 64, 64, 4
        $region24: #{tpu_custom_call.1} parent=15 // pred_fallthru
          _
      $region16: #{tpu_custom_call.1} parent=5 // pred_fallthru
        _
      %p165 = scmp.le.s32.totalorder 1, %s14
      %p166 = scmp.lt.s32.totalorder %s14, 9
      %p167 = pnand %p165, %p166
      %p168 = pneg %p167
      // Predicated region
      $region25: #{tpu_custom_call.1} parent=5 // pred_check
        _
      $region26: #{tpu_custom_call.1} parent=5 // pred_check_branch
        %170 = sbr.rel (%p167) target = $region28
      $region27: #{tpu_custom_call.1} parent=5 // pred_region
        %s171 = ssub.s32 %s14, 1
        %s172 = sand.u32 %s39, 1
        %s173 = scalar_lea.sflag [#allocation6], %s172
        %s174 = sand.u32 %s39, 1
        %s175 = smul.addr %s174, 16
        %s176 = scalar_lea.vmem [#allocation5], %s175
        // Predicated region
        $region29: #{tpu_custom_call.1} parent=27 // pred_check
          %p177 = pneg %p52
        $region30: #{tpu_custom_call.1} parent=27 // pred_check_branch
          %179 = sbr.rel (%p177) target = $region32
        $region31: #{tpu_custom_call.1} parent=27 // pred_region
          %180 = dma.done %s173, 256
        $region32: #{tpu_custom_call.1} parent=27 // pred_fallthru
          _
        %s181 = sand.u32 %s65, 1
        %s182 = scalar_lea.sflag [#allocation8], %s181
        %s183 = sand.u32 %s65, 1
        %s184 = smul.addr %s183, 8
        %s185 = scalar_lea.vmem [#allocation7], %s184
        // Predicated region
        $region33: #{tpu_custom_call.1} parent=27 // pred_check
          %p186 = pneg %p78
        $region34: #{tpu_custom_call.1} parent=27 // pred_check_branch
          %188 = sbr.rel (%p186) target = $region36
        $region35: #{tpu_custom_call.1} parent=27 // pred_region
          %189 = dma.done %s182, 128
        $region36: #{tpu_custom_call.1} parent=27 // pred_fallthru
          _
        %s190 = sand.u32 %s39, 1
        %s191 = scalar_lea.sflag [#allocation6], %s190
        %s192 = sand.u32 %s39, 1
        %s193 = smul.addr %s192, 16
        %s194 = scalar_lea.vmem [#allocation5], %s193
        %p195 = pneg %p52
        %p196 = pneg %p49
        %s197 = sand.u32 %s65, 1
        %s198 = scalar_lea.sflag [#allocation8], %s197
        %s199 = sand.u32 %s65, 1
        %s200 = smul.addr %s199, 8
        %s201 = scalar_lea.vmem [#allocation7], %s200
        %p202 = pneg %p78
        %p203 = pneg %p75
        %p204 = pneg %p104
        %p205 = pneg %p101
        %s206 = smul.u32 4, %s23
        %p207 = scmp.lt.s32.totalorder %s206, 7
        %s208 = scalar_select %p207, %s206, 7
        %s209 = smul.addr %s208, 8
        %s210 = scalar_lea.vmem %s2, %s209
        %s211 = smul.u32 4, %s23
        %s212 = smul.u32 2, %s24
        %s213 = smul.u32 4, %s23
        %p214 = scmp.lt.s32.totalorder %s213, 7
        %s215 = scalar_select %p214, %s213, 7
        %s216 = smul.addr %s215, 8
        %s217 = scalar_lea.vmem %s2, %s216
        %s218 = smul.u32 4, %s23
        %s220 = smul.u32 %s23, 32
        %s221 = smul.u32 %s24, 16
        %p222 = scmp.eq.s32.totalorder %s24, 0
        // Predicated region
        $region37: #{tpu_custom_call.1} parent=27 // pred_check
          %p223 = pneg %p222
        $region38: #{tpu_custom_call.1} parent=27 // pred_check_branch
          %225 = sbr.rel (%p223) target = $region40
        $region39: #{tpu_custom_call.1} parent=27 // pred_region
          %vm226 = vcmask 7168
          %227 = vst.msk [vmem:[#allocation2] sm:$0xff] %vm226, -inf
          %228 = vst.msk [vmem:[#allocation2 + $0x8] sm:$0xff] %vm226, -inf
          %229 = vst.msk [vmem:[#allocation2 + $0x10] sm:$0xff] %vm226, -inf
          %230 = vst.msk [vmem:[#allocation2 + $0x18] sm:$0xff] %vm226, -inf
          %231 = vst.msk [vmem:[#allocation3] sm:$0xff] %vm226, 0.0
          %232 = vst.msk [vmem:[#allocation3 + $0x8] sm:$0xff] %vm226, 0.0
          %233 = vst.msk [vmem:[#allocation3 + $0x10] sm:$0xff] %vm226, 0.0
          %234 = vst.msk [vmem:[#allocation3 + $0x18] sm:$0xff] %vm226, 0.0
          %235 = vst.msk [vmem:[#allocation4] sm:$0xff] %vm226, 0.0
          %236 = vst.msk [vmem:[#allocation4 + $0x8] sm:$0xff] %vm226, 0.0
          %237 = vst.msk [vmem:[#allocation4 + $0x10] sm:$0xff] %vm226, 0.0
          %238 = vst.msk [vmem:[#allocation4 + $0x18] sm:$0xff] %vm226, 0.0
        $region40: #{tpu_custom_call.1} parent=27 // pred_fallthru
          _
        %v239 = vld [vmem:[%s176] sm:$0xf]
        %v240 = vld [vmem:[%s176 + $0x4] sm:$0xf]
        %v241 = vld [vmem:[%s176 + $0x8] sm:$0xf]
        %v242 = vld [vmem:[%s176 + $0xc] sm:$0xf]
        %v243 = vld [vmem:[%s185] sm:$0xf]
        %v244 = vld [vmem:[%s185 + $0x4] sm:$0xf]
        %v249 = vunpack.c.l.b16 %v239
        %v250 = vunpack.c.l.b16 %v240
        %v251 = vunpack.c.l.b16 %v241
        %v252 = vunpack.c.l.b16 %v242
        %v253 = vpack.c.b16 %v250, %v249
        %v254 = vpack.c.b16 %v252, %v251
        %v259 = vunpack.c.l.b16 %v243
        %v260 = vunpack.c.l.b16 %v244
        %v261 = vpack.c.b16 %v260, %v259
        %263 = vmatprep.subr.bf16.mxu0 0
        %264 = vmatpush1.bf16.xpose.msra.mxu0 %v261
        %265 = vmatprep.subr.bf16.mxu0 0
        %266 = vmatpush1.bf16.xpose.msra.mxu0 0
        %267 = vmatprep.subr.bf16.mxu0 0
        %268 = vmatpush1.bf16.xpose.msra.mxu0 0
        %269 = vmatprep.subr.bf16.mxu0 0
        %270 = vmatpush1.bf16.xpose.msra.mxu0 0
        %271 = vmatprep.subr.bf16.mxu0 0
        %272 = vmatpush1.bf16.xpose.msra.mxu0 0
        %273 = vmatprep.subr.bf16.mxu0 0
        %274 = vmatpush1.bf16.xpose.msra.mxu0 0
        %275 = vmatprep.subr.bf16.mxu0 0
        %276 = vmatpush1.bf16.xpose.msra.mxu0 0
        %277 = vmatprep.subr.bf16.mxu0 0
        %278 = vmatpush1.bf16.xpose.msra.mxu0 0
        %279 = vmatprep.subr.bf16.mxu0 0
        %280 = vmatpush1.bf16.xpose.msra.mxu0 0
        %281 = vmatprep.subr.bf16.mxu0 0
        %282 = vmatpush1.bf16.xpose.msra.mxu0 0
        %283 = vmatprep.subr.bf16.mxu0 0
        %284 = vmatpush1.bf16.xpose.msra.mxu0 0
        %285 = vmatprep.subr.bf16.mxu0 0
        %286 = vmatpush1.bf16.xpose.msra.mxu0 0
        %287 = vmatprep.subr.bf16.mxu0 0
        %288 = vmatpush1.bf16.xpose.msra.mxu0 0
        %289 = vmatprep.subr.bf16.mxu0 0
        %290 = vmatpush1.bf16.xpose.msra.mxu0 0
        %291 = vmatprep.subr.bf16.mxu0 0
        %292 = vmatpush1.bf16.xpose.msra.mxu0 0
        %293 = vmatprep.subr.bf16.mxu0 0
        %294 = vmatpush1.bf16.xpose.msra.mxu0 0
        %295 = vmatprep.mubr.bf16.mxu0 0
        %296 = vmatmul.mubr.bf16.gmra.mrb[0].mxu0 %v253
        %v297 = vpop.f32.mrb[0].mxu0
        %v298 = vadd.f32 0.0, %v297
        %v299 = vpop.f32.mrb[0].mxu0
        %v300 = vpop.f32.mrb[0].mxu0
        %v301 = vadd.f32 0.0, %v300
        %v302 = vpop.f32.mrb[0].mxu0
        %303 = vmatprep.mubr.bf16.mxu0 0
        %304 = vmatmul.mubr.bf16.gmra.mrb[0].mxu0 %v254
        %v305 = vpop.f32.mrb[0].mxu0
        %v306 = vadd.f32 0.0, %v305
        %v307 = vpop.f32.mrb[0].mxu0
        %v308 = vpop.f32.mrb[0].mxu0
        %v309 = vadd.f32 0.0, %v308
        %v310 = vpop.f32.mrb[0].mxu0
        %311 = vdwg.mxu0
        %v312 = vmul.f32 %v298, 2.0
        %v313 = vmul.f32 %v301, 2.0
        %v314 = vmul.f32 %v306, 2.0
        %v315 = vmul.f32 %v309, 2.0
        %s316 = sadd.s32 %s220, 32
        %p317 = scmp.lt.s32.totalorder %s221, %s316
        %s318 = sadd.s32 %s221, 16
        %p319 = scmp.gt.s32.totalorder %s318, %s220
        %p320 = pnand %p317, %p319
        %p321 = pneg %p320
        // Predicated region
        $region41: #{tpu_custom_call.1} parent=27 // pred_check
          _
        $region42: #{tpu_custom_call.1} parent=27 // pred_check_branch
          %323 = sbr.rel (%p320) target = $region44
        $region43: #{tpu_custom_call.1} parent=27 // pred_region
          %v324 = vlaneseq
          %v325 = vshrl.u32 %v324, 7
          %v326 = vadd.s32 %v325, 8
          %v327 = vadd.s32 %v325, 16
          %v328 = vadd.s32 %v325, 24
          %v329 = vstv %s220
          %v330 = vadd.s32 %v325, %v329
          %v331 = vadd.s32 %v326, %v329
          %v332 = vadd.s32 %v327, %v329
          %v333 = vadd.s32 %v328, %v329
          %v334 = vlaneseq
          %v335 = vand.u32 %v334, 127
          %v336 = vstv %s221
          %v337 = vadd.s32 %v335, %v336
          %v338 = vld [vmem:[#allocation4] sm:$0xff]
          %v339 = vld [vmem:[#allocation4 + $0x8] sm:$0xff]
          %v340 = vld [vmem:[#allocation4 + $0x10] sm:$0xff]
          %v341 = vld [vmem:[#allocation4 + $0x18] sm:$0xff]
          %vm342 = vcmp.eq.s32.totalorder %v330, %v337
          %vm343 = vcmp.eq.s32.totalorder %v331, %v337
          %vm344 = vcmp.eq.s32.totalorder %v332, %v337
          %vm345 = vcmp.eq.s32.totalorder %v333, %v337
          %v346 = vsel %vm342, %v312, 0.0
          %v347 = vsel %vm343, %v313, 0.0
          %v348 = vsel %vm344, %v314, 0.0
          %v349 = vsel %vm345, %v315, 0.0
          %vm350 = vcmask 130048
          %v351 = vsel %vm350, %v346, 0.0
          %352 = vadd.xlane.f32.xlu0 %v351
          %v353 = vpop.xlane.xlu0 %352
          %v354 = vsel %vm350, %v347, 0.0
          %355 = vadd.xlane.f32.xlu0 %v354
          %v356 = vpop.xlane.xlu0 %355
          %v357 = vsel %vm350, %v348, 0.0
          %358 = vadd.xlane.f32.xlu0 %v357
          %v359 = vpop.xlane.xlu0 %358
          %v360 = vsel %vm350, %v349, 0.0
          %361 = vadd.xlane.f32.xlu0 %v360
          %v362 = vpop.xlane.xlu0 %361
          %v363 = vadd.f32 %v338, %v353
          %v364 = vadd.f32 %v339, %v356
          %v365 = vadd.f32 %v340, %v359
          %v366 = vadd.f32 %v341, %v362
          %vm367 = vcmask 7168
          %368 = vst.msk [vmem:[#allocation4] sm:$0xff] %vm367, %v363
          %369 = vst.msk [vmem:[#allocation4 + $0x8] sm:$0xff] %vm367, %v364
          %370 = vst.msk [vmem:[#allocation4 + $0x10] sm:$0xff] %vm367, %v365
          %371 = vst.msk [vmem:[#allocation4 + $0x18] sm:$0xff] %vm367, %v366
        $region44: #{tpu_custom_call.1} parent=27 // pred_fallthru
          _
        %v372 = vld [vmem:[#allocation2] sm:$0xff]
        %v373 = vld [vmem:[#allocation2 + $0x8] sm:$0xff]
        %v374 = vld [vmem:[#allocation2 + $0x10] sm:$0xff]
        %v375 = vld [vmem:[#allocation2 + $0x18] sm:$0xff]
        %vm376 = vcmask 130048
        %v377 = vsel %vm376, %v312, -inf
        %378 = vmax.xlane.f32.xlu0 %v377
        %v379 = vpop.xlane.xlu0 %378
        %v380 = vsel %vm376, %v313, -inf
        %381 = vmax.xlane.f32.xlu0 %v380
        %v382 = vpop.xlane.xlu0 %381
        %v383 = vsel %vm376, %v314, -inf
        %384 = vmax.xlane.f32.xlu0 %v383
        %v385 = vpop.xlane.xlu0 %384
        %v386 = vsel %vm376, %v315, -inf
        %387 = vmax.xlane.f32.xlu0 %v386
        %v388 = vpop.xlane.xlu0 %387
        %v389 = vmax.f32 %v372, %v379
        %v390 = vmax.f32 %v373, %v382
        %v391 = vmax.f32 %v374, %v385
        %v392 = vmax.f32 %v375, %v388
        %v393 = vsub.f32 %v372, %v389
        %v394 = vsub.f32 %v373, %v390
        %v395 = vsub.f32 %v374, %v391
        %v396 = vsub.f32 %v375, %v392
        %v397 = vmul.f32 %v393, 1.442695
        %v398 = vpow.pop %v397
        %v399 = vmul.f32 %v394, 1.442695
        %v400 = vpow.pop %v399
        %v401 = vmul.f32 %v395, 1.442695
        %v402 = vpow.pop %v401
        %v403 = vmul.f32 %v396, 1.442695
        %v404 = vpow.pop %v403
        %406 = vset.pattern.permute.xlu0 0
        %407 = vperm.xlu0 %406, %v389
        %v408 = vpop.permute.xlu0 %407
        %411 = vset.pattern.permute.xlu0 0
        %412 = vperm.xlu0 %411, %v390
        %v413 = vpop.permute.xlu0 %412
        %416 = vset.pattern.permute.xlu0 0
        %417 = vperm.xlu0 %416, %v391
        %v418 = vpop.permute.xlu0 %417
        %421 = vset.pattern.permute.xlu0 0
        %422 = vperm.xlu0 %421, %v392
        %v423 = vpop.permute.xlu0 %422
        %v425 = vsub.f32 %v312, %v408
        %v426 = vsub.f32 %v313, %v413
        %v427 = vsub.f32 %v314, %v418
        %v428 = vsub.f32 %v315, %v423
        %v429 = vmul.f32 %v425, 1.442695
        %v430 = vpow.pop %v429
        %v431 = vmul.f32 %v426, 1.442695
        %v432 = vpow.pop %v431
        %v433 = vmul.f32 %v427, 1.442695
        %v434 = vpow.pop %v433
        %v435 = vmul.f32 %v428, 1.442695
        %v436 = vpow.pop %v435
        %v437 = vld [vmem:[#allocation3] sm:$0xff]
        %v438 = vld [vmem:[#allocation3 + $0x8] sm:$0xff]
        %v439 = vld [vmem:[#allocation3 + $0x10] sm:$0xff]
        %v440 = vld [vmem:[#allocation3 + $0x18] sm:$0xff]
        %v441 = vmul.f32 %v398, %v437
        %v442 = vmul.f32 %v400, %v438
        %v443 = vmul.f32 %v402, %v439
        %v444 = vmul.f32 %v404, %v440
        %v445 = vsel %vm376, %v430, 0.0
        %446 = vadd.xlane.f32.xlu0 %v445
        %v447 = vpop.xlane.xlu0 %446
        %v448 = vsel %vm376, %v432, 0.0
        %449 = vadd.xlane.f32.xlu0 %v448
        %v450 = vpop.xlane.xlu0 %449
        %v451 = vsel %vm376, %v434, 0.0
        %452 = vadd.xlane.f32.xlu0 %v451
        %v453 = vpop.xlane.xlu0 %452
        %v454 = vsel %vm376, %v436, 0.0
        %455 = vadd.xlane.f32.xlu0 %v454
        %v456 = vpop.xlane.xlu0 %455
        %v457 = vadd.f32 %v441, %v447
        %v458 = vadd.f32 %v442, %v450
        %v459 = vadd.f32 %v443, %v453
        %v460 = vadd.f32 %v444, %v456
        %vm461 = vcmask 7168
        %462 = vst.msk [vmem:[#allocation3] sm:$0xff] %vm461, %v457
        %463 = vst.msk [vmem:[#allocation3 + $0x8] sm:$0xff] %vm461, %v458
        %464 = vst.msk [vmem:[#allocation3 + $0x10] sm:$0xff] %vm461, %v459
        %465 = vst.msk [vmem:[#allocation3 + $0x18] sm:$0xff] %vm461, %v460
        %466 = vst.msk [vmem:[#allocation2] sm:$0xff] %vm461, %v389
        %467 = vst.msk [vmem:[#allocation2 + $0x8] sm:$0xff] %vm461, %v390
        %468 = vst.msk [vmem:[#allocation2 + $0x10] sm:$0xff] %vm461, %v391
        %469 = vst.msk [vmem:[#allocation2 + $0x18] sm:$0xff] %vm461, %v392
        %p470 = scmp.eq.s32.totalorder %s24, 3
        // Predicated region
        $region45: #{tpu_custom_call.1} parent=27 // pred_check
          %p471 = pneg %p470
        $region46: #{tpu_custom_call.1} parent=27 // pred_check_branch
          %473 = sbr.rel (%p471) target = $region48
        $region47: #{tpu_custom_call.1} parent=27 // pred_region
          %v474 = vld [vmem:[#allocation2] sm:$0xff]
          %v475 = vld [vmem:[#allocation2 + $0x8] sm:$0xff]
          %v476 = vld [vmem:[#allocation2 + $0x10] sm:$0xff]
          %v477 = vld [vmem:[#allocation2 + $0x18] sm:$0xff]
          %v478 = vld [vmem:[#allocation3] sm:$0xff]
          %v479 = vld [vmem:[#allocation3 + $0x8] sm:$0xff]
          %v480 = vld [vmem:[#allocation3 + $0x10] sm:$0xff]
          %v481 = vld [vmem:[#allocation3 + $0x18] sm:$0xff]
          %v482 = vlog2.pop %v478
          %v483 = vmul.f32 %v482, 0.6931472
          %v484 = vlog2.pop %v479
          %v485 = vmul.f32 %v484, 0.6931472
          %v486 = vlog2.pop %v480
          %v487 = vmul.f32 %v486, 0.6931472
          %v488 = vlog2.pop %v481
          %v489 = vmul.f32 %v488, 0.6931472
          %v490 = vadd.f32 %v474, %v483
          %v491 = vadd.f32 %v475, %v485
          %v492 = vadd.f32 %v476, %v487
          %v493 = vadd.f32 %v477, %v489
          %v494 = vld [vmem:[#allocation4] sm:$0xff]
          %v495 = vld [vmem:[#allocation4 + $0x8] sm:$0xff]
          %v496 = vld [vmem:[#allocation4 + $0x10] sm:$0xff]
          %v497 = vld [vmem:[#allocation4 + $0x18] sm:$0xff]
          %v498 = vsub.f32 %v490, %v494
          %v499 = vsub.f32 %v491, %v495
          %v500 = vsub.f32 %v492, %v496
          %v501 = vsub.f32 %v493, %v497
          %502 = vst.msk [vmem:[%s217] sm:$0xff] %vm461, %v498
          %503 = vst.msk [vmem:[%s217 + $0x8] sm:$0xff] %vm461, %v499
          %504 = vst.msk [vmem:[%s217 + $0x10] sm:$0xff] %vm461, %v500
          %505 = vst.msk [vmem:[%s217 + $0x18] sm:$0xff] %vm461, %v501
        $region48: #{tpu_custom_call.1} parent=27 // pred_fallthru
          _
        %s506 = smul.u32 4, %s23
        %p507 = scmp.lt.s32.totalorder %s506, 7
        %s508 = scalar_select %p507, %s506, 7
        %s509 = smul.addr %s508, 8
        %s510 = scalar_lea.vmem %s2, %s509
        // Predicated region
        $region49: #{tpu_custom_call.1} parent=27 // pred_check
          %p511 = pneg %p101
        $region50: #{tpu_custom_call.1} parent=27 // pred_check_branch
          %513 = sbr.rel (%p511) target = $region52
        $region51: #{tpu_custom_call.1} parent=27 // pred_region
          %s514 = smul.u32 4, %s23
        $region52: #{tpu_custom_call.1} parent=27 // pred_fallthru
          _
      $region28: #{tpu_custom_call.1} parent=5 // pred_fallthru
        _
      %p515 = scmp.le.s32.totalorder 2, %s14
      // Predicated region
      $region53: #{tpu_custom_call.1} parent=5 // pred_check
        %p516 = pneg %p515
      $region54: #{tpu_custom_call.1} parent=5 // pred_check_branch
        %518 = sbr.rel (%p516) target = $region56
      $region55: #{tpu_custom_call.1} parent=5 // pred_region
        %s519 = ssub.s32 %s14, 2
        // Predicated region
        $region57: #{tpu_custom_call.1} parent=55 // pred_check
          %p520 = pneg %p107
        $region58: #{tpu_custom_call.1} parent=55 // pred_check_branch
          %522 = sbr.rel (%p520) target = $region60
        $region59: #{tpu_custom_call.1} parent=55 // pred_region
          %s523 = smul.u32 4, %s25
          %p524 = scmp.lt.s32.totalorder %s523, 7
          %s525 = scalar_select %p524, %s523, 7
          %s526 = smul.addr %s525, 8
          %s527 = scalar_lea.vmem %s2, %s526
        $region60: #{tpu_custom_call.1} parent=55 // pred_fallthru
          _
      $region56: #{tpu_custom_call.1} parent=5 // pred_fallthru
        _
    $region6: #{tpu_custom_call.1} parent=1 // loop_footer
      %s18 = sadd.s32 1, %s14
    $region7: #{tpu_custom_call.1} parent=1 // loop_footer_branch
      %13 = sbr.rel target = $region3
    $region8: #{tpu_custom_call.1} parent=1 // loop_exit
      _
    %528 = vsyncpa [#allocation6], 1
    %s529 = scalar_lea.sflag [#allocation6], 1
    %530 = vsyncpa %s529, 1
    %531 = vsyncpa [#allocation8], 1
    %s532 = scalar_lea.sflag [#allocation8], 1
    %533 = vsyncpa %s532, 1

</llo_original>
